<compile_context>
chip_gen: v7x
topology: tpu7x:2x2x1
jax: 0.10.0
libtpu: 0.0.40
codegen_flags: <defaults>
</compile_context>

<pallas_src>
import functools

import jax
import jax.numpy as jnp
from jax.experimental import pallas as pl
from jax.experimental.pallas import tpu as pltpu


LANE = 128
SUBLANE = 8


# ----------------------------- helpers ---------------------------------------


def _round_up(n, m):
    return ((n + m - 1) // m) * m


def _pad2d(a, rows, cols):
    r, c = a.shape
    if r == rows and c == cols:
        return a
    return jnp.pad(a, ((0, rows - r), (0, cols - c)))


# ----------------------------- kernel -----------------------------------------


def _encoder_kernel(*refs, num_hidden, emb_pad, compute_dtype):
    """Fused encoder: x -> [Linear+ReLU]*L -> concat-head matmul -> mu|logvar|std.

    refs = (x_ref, w_0, b_0, ..., w_{L-1}, b_{L-1}, w_head, b_head, out_ref)

    All feature dims are pre-padded to multiples of 128 lanes, so every matmul
    operand and every store is lane-dense. Intermediate activations live only
    in vregs/VMEM (never round-tripped through HBM).
    """
    x_ref = refs[0]
    out_ref = refs[-1]

    h = x_ref[...]
    idx = 1
    for _ in range(num_hidden):
        w_ref, b_ref = refs[idx], refs[idx + 1]
        idx += 2
        y = jnp.dot(h.astype(compute_dtype), w_ref[...],
                    preferred_element_type=jnp.float32)
        h = jnp.maximum(y + b_ref[...], 0.0)          # f32 activations

    wh_ref, bh_ref = refs[idx], refs[idx + 1]
    heads = jnp.dot(h.astype(compute_dtype), wh_ref[...],
                    preferred_element_type=jnp.float32) + bh_ref[...]
    # heads columns: [0:emb_pad) = mu, [emb_pad:2*emb_pad) = logvar
    logvar = heads[:, emb_pad:]
    std = jnp.exp(0.5 * logvar)                        # EUP slot, effectively free

    out_ref[:, : 2 * emb_pad] = heads.astype(out_ref.dtype)   # mu | logvar
    out_ref[:, 2 * emb_pad:] = std.astype(out_ref.dtype)      # std


# ----------------------------- wrapper ----------------------------------------


def encoder_forward(params, x, *, tm=256, compute_dtype=jnp.float32):
    """Fused Pallas forward. Returns (mu, std, logvar) exactly like the module."""
    B, D = x.shape
    seq = params["seq"]
    w1, b1 = params["fc1"]
    w2, b2 = params["fc2"]
    emb = w1.shape[1]

    # Lane-dense padded dims.
    dims = [D] + [w.shape[1] for (w, _) in seq]
    dims_pad = [_round_up(d, LANE) for d in dims]
    emb_pad = _round_up(emb, LANE)
    out_cols = 3 * emb_pad                              # mu | logvar | std

    # Batch tiling: tm=256 matches v6e/v7x MXU native dim (use tm=128 on v5e).
    tm_eff = _round_up(min(tm, _round_up(B, SUBLANE)), SUBLANE)
    b_pad = _round_up(B, tm_eff)
    nb = b_pad // tm_eff

    x_p = _pad2d(x, b_pad, dims_pad[0])

    # Pad (and optionally down-cast) weights; concat the two head weights so a
    # single matmul produces [mu | logvar]. Biases stay f32 (added post-MXU).
    ops = []
    for li, (w, b) in enumerate(seq):
        ops.append(_pad2d(w, dims_pad[li], dims_pad[li + 1]).astype(compute_dtype))
        ops.append(_pad2d(b, 1, dims_pad[li + 1]).astype(jnp.float32))
    wh = jnp.concatenate([_pad2d(w1, dims_pad[-1], emb_pad),
                          _pad2d(w2, dims_pad[-1], emb_pad)], axis=1)
    bh = jnp.concatenate([_pad2d(b1, 1, emb_pad),
                          _pad2d(b2, 1, emb_pad)], axis=1)
    ops.append(wh.astype(compute_dtype))
    ops.append(bh.astype(jnp.float32))

    # BlockSpecs: x/out tiled over the batch grid; weights/biases use a constant
    # block index so they are DMA'd once and stay resident in VMEM.
    in_specs = [pl.BlockSpec((tm_eff, dims_pad[0]), lambda i: (i, 0))]
    for a in ops:
        in_specs.append(pl.BlockSpec(a.shape, lambda i: (0, 0)))
    out_spec = pl.BlockSpec((tm_eff, out_cols), lambda i: (i, 0))

    # VMEM budget: sized against v7x (64 MiB physical), not v6e's 128 MiB.
    bytes_params = sum(int(a.size) * a.dtype.itemsize for a in ops)
    bytes_io = 4 * tm_eff * (dims_pad[0] + out_cols) * 2          # double-buffered IO
    bytes_act = 4 * tm_eff * max(dims_pad + [2 * emb_pad]) * 4    # live intermediates
    vmem_limit = int(min(48 * 1024 * 1024,
                         max(8 * 1024 * 1024,
                             2 * (bytes_params + bytes_io + bytes_act))))

    kernel = functools.partial(_encoder_kernel, num_hidden=len(seq),
                               emb_pad=emb_pad, compute_dtype=compute_dtype)

    packed = pl.pallas_call(
        kernel,
        out_shape=jax.ShapeDtypeStruct((b_pad, out_cols), jnp.float32),
        grid=(nb,),
        in_specs=in_specs,
        out_specs=out_spec,
        compiler_params=pltpu.CompilerParams(
            dimension_semantics=("parallel",),   # v7x: shard batch tiles across 2 TCs
            vmem_limit_bytes=vmem_limit),
    )(x_p, *ops)

    packed = packed[:B]
    mu = packed[:, :emb]
    logvar = packed[:, emb_pad:emb_pad + emb]
    std = packed[:, 2 * emb_pad:2 * emb_pad + emb]
    return mu, std, logvar


# ----------------------------- params / reference ------------------------------


def init_encoder_params(key, data_dim, compress_dims, embedding_dim):
    """Deterministic init mimicking torch Linear's U(-1/sqrt(fan_in), .).

    Weights are stored as (in, out) = torch weight transposed.
    """
    params = {"seq": []}
    dim = data_dim
    for item in compress_dims:
        key, kw, kb = jax.random.split(key, 3)
        bound = 1.0 / jnp.sqrt(dim)
        w = jax.random.uniform(kw, (dim, item), jnp.float32, -bound, bound)
        b = jax.random.uniform(kb, (1, item), jnp.float32, -bound, bound)
        params["seq"].append((w, b))
        dim = item
    bound = 1.0 / jnp.sqrt(dim)
    key, k1w, k1b, k2w, k2b = jax.random.split(key, 5)
    params["fc1"] = (
        jax.random.uniform(k1w, (dim, embedding_dim), jnp.float32, -bound, bound),
        jax.random.uniform(k1b, (1, embedding_dim), jnp.float32, -bound, bound),
    )
    params["fc2"] = (
        jax.random.uniform(k2w, (dim, embedding_dim), jnp.float32, -bound, bound),
        jax.random.uniform(k2b, (1, embedding_dim), jnp.float32, -bound, bound),
    )
    return params


def encoder_forward_ref(params, x):
    """Pure-JAX reference for correctness checking."""
    feature = x
    for (w, b) in params["seq"]:
        feature = jnp.maximum(feature @ w + b, 0.0)
    w1, b1 = params["fc1"]
    w2, b2 = params["fc2"]
    mu = feature @ w1 + b1
    logvar = feature @ w2 + b2
    std = jnp.exp(0.5 * logvar)
    return mu, std, logvar


# ----------------------------- main --------------------------------------------

if __name__ == "__main__":
    # Small shapes consistent with the module's forward.
    batch = 8
    data_dim = 32
    compress_dims = (64, 32)
    embedding_dim = 16

    key = jax.random.PRNGKey(0)
    key, kx = jax.random.split(key)
    x = jax.random.normal(kx, (batch, data_dim), dtype=jnp.float32)
    params = init_encoder_params(key, data_dim, compress_dims, embedding_dim)

    # --- f32 compute path: exact match against pure-JAX reference -------------
    mu, std, logvar = encoder_forward(params, x, compute_dtype=jnp.float32)
    jax.block_until_ready((mu, std, logvar))

    mu_r, std_r, logvar_r = encoder_forward_ref(params, x)
    assert mu.shape == (batch, embedding_dim)
    assert std.shape == (batch, embedding_dim)
    assert logvar.shape == (batch, embedding_dim)
    assert jnp.allclose(mu, mu_r, atol=1e-5, rtol=1e-5)
    assert jnp.allclose(std, std_r, atol=1e-5, rtol=1e-5)
    assert jnp.allclose(logvar, logvar_r, atol=1e-5, rtol=1e-5)

    # --- non-divisible batch exercising the batch grid (padding + slicing) ----
    key, kx2 = jax.random.split(key)
    x2 = jax.random.normal(kx2, (300, data_dim), dtype=jnp.float32)
    mu2, std2, logvar2 = encoder_forward(params, x2, tm=128,
                                         compute_dtype=jnp.float32)
    jax.block_until_ready((mu2, std2, logvar2))
    mu2_r, std2_r, logvar2_r = encoder_forward_ref(params, x2)
    assert jnp.allclose(mu2, mu2_r, atol=1e-5, rtol=1e-5)
    assert jnp.allclose(std2, std2_r, atol=1e-5, rtol=1e-5)
    assert jnp.allclose(logvar2, logvar2_r, atol=1e-5, rtol=1e-5)

    # --- bf16 weight path (v6e/v7x MXU-friendly); loose tolerance --------------
    mu_bf, std_bf, logvar_bf = encoder_forward(params, x,
                                               compute_dtype=jnp.bfloat16)
    jax.block_until_ready((mu_bf, std_bf, logvar_bf))
    assert jnp.allclose(mu_bf, mu_r, atol=0.15, rtol=0.15)
    assert jnp.allclose(std_bf, std_r, atol=0.15, rtol=0.15)
    assert jnp.allclose(logvar_bf, logvar_r, atol=0.15, rtol=0.15)

    print("KERNEL_OK")
</pallas_src>

<mosaic_0001>
module attributes {stable_mosaic.version = 11 : i64} {
  func.func @_encoder_kernel(%arg0: i32, %arg1: memref<8x128xf32, #tpu.memory_space<vmem>>, %arg2: memref<128x128xf32, #tpu.memory_space<vmem>>, %arg3: memref<1x128xf32, #tpu.memory_space<vmem>>, %arg4: memref<128x128xf32, #tpu.memory_space<vmem>>, %arg5: memref<1x128xf32, #tpu.memory_space<vmem>>, %arg6: memref<128x256xf32, #tpu.memory_space<vmem>>, %arg7: memref<1x256xf32, #tpu.memory_space<vmem>>, %arg8: memref<8x384xf32, #tpu.memory_space<vmem>>) attributes {dimension_semantics = [#tpu.dimension_semantics<parallel>], iteration_bounds = array<i64: 1>, scalar_prefetch = 0 : i64, scratch_operands = 0 : i64, tpu.core_type = #tpu.core_type<tc>, window_params = [{transform_indices = @transform_0, window_bounds = array<i64: 8, 128>}, {pipeline_mode = #tpu.pipeline_mode<synchronous>, transform_indices = @transform_1, window_bounds = array<i64: 128, 128>}, {pipeline_mode = #tpu.pipeline_mode<synchronous>, transform_indices = @transform_2, window_bounds = array<i64: 1, 128>}, {pipeline_mode = #tpu.pipeline_mode<synchronous>, transform_indices = @transform_3, window_bounds = array<i64: 128, 128>}, {pipeline_mode = #tpu.pipeline_mode<synchronous>, transform_indices = @transform_4, window_bounds = array<i64: 1, 128>}, {pipeline_mode = #tpu.pipeline_mode<synchronous>, transform_indices = @transform_5, window_bounds = array<i64: 128, 256>}, {pipeline_mode = #tpu.pipeline_mode<synchronous>, transform_indices = @transform_6, window_bounds = array<i64: 1, 256>}, {transform_indices = @transform_7, window_bounds = array<i64: 8, 384>}]} {
    %c0 = arith.constant 0 : index
    %c0_0 = arith.constant 0 : index
    %0 = vector.load %arg1[%c0, %c0_0] : memref<8x128xf32, #tpu.memory_space<vmem>>, vector<8x128xf32>
    %c0_1 = arith.constant 0 : index
    %c0_2 = arith.constant 0 : index
    %1 = vector.load %arg2[%c0_1, %c0_2] : memref<128x128xf32, #tpu.memory_space<vmem>>, vector<128x128xf32>
    %cst = arith.constant dense<0.000000e+00> : vector<8x128xf32>
    %2 = tpu.matmul %0, %1, %cst {dimension_numbers = #tpu.dot_dimension_numbers<[1], [0], [0], [1], [0, 0, 1, 1], [], []>} : vector<8x128xf32>, vector<128x128xf32>, vector<8x128xf32> -> vector<8x128xf32>
    %c0_3 = arith.constant 0 : index
    %c0_4 = arith.constant 0 : index
    %3 = vector.load %arg3[%c0_3, %c0_4] : memref<1x128xf32, #tpu.memory_space<vmem>>, vector<1x128xf32>
    %4 = vector.broadcast %3 : vector<1x128xf32> to vector<8x128xf32>
    %5 = arith.addf %2, %4 : vector<8x128xf32>
    %cst_5 = arith.constant 0.000000e+00 : f32
    %6 = vector.broadcast %cst_5 : f32 to vector<8x128xf32>
    %7 = arith.maximumf %5, %6 : vector<8x128xf32>
    %c0_6 = arith.constant 0 : index
    %c0_7 = arith.constant 0 : index
    %8 = vector.load %arg4[%c0_6, %c0_7] : memref<128x128xf32, #tpu.memory_space<vmem>>, vector<128x128xf32>
    %cst_8 = arith.constant dense<0.000000e+00> : vector<8x128xf32>
    %9 = tpu.matmul %7, %8, %cst_8 {dimension_numbers = #tpu.dot_dimension_numbers<[1], [0], [0], [1], [0, 0, 1, 1], [], []>} : vector<8x128xf32>, vector<128x128xf32>, vector<8x128xf32> -> vector<8x128xf32>
    %c0_9 = arith.constant 0 : index
    %c0_10 = arith.constant 0 : index
    %10 = vector.load %arg5[%c0_9, %c0_10] : memref<1x128xf32, #tpu.memory_space<vmem>>, vector<1x128xf32>
    %11 = vector.broadcast %10 : vector<1x128xf32> to vector<8x128xf32>
    %12 = arith.addf %9, %11 : vector<8x128xf32>
    %cst_11 = arith.constant 0.000000e+00 : f32
    %13 = vector.broadcast %cst_11 : f32 to vector<8x128xf32>
    %14 = arith.maximumf %12, %13 : vector<8x128xf32>
    %c0_12 = arith.constant 0 : index
    %c0_13 = arith.constant 0 : index
    %15 = vector.load %arg6[%c0_12, %c0_13] : memref<128x256xf32, #tpu.memory_space<vmem>>, vector<128x256xf32>
    %cst_14 = arith.constant dense<0.000000e+00> : vector<8x256xf32>
    %16 = tpu.matmul %14, %15, %cst_14 {dimension_numbers = #tpu.dot_dimension_numbers<[1], [0], [0], [1], [0, 0, 1, 1], [], []>} : vector<8x128xf32>, vector<128x256xf32>, vector<8x256xf32> -> vector<8x256xf32>
    %c0_15 = arith.constant 0 : index
    %c0_16 = arith.constant 0 : index
    %17 = vector.load %arg7[%c0_15, %c0_16] : memref<1x256xf32, #tpu.memory_space<vmem>>, vector<1x256xf32>
    %18 = vector.broadcast %17 : vector<1x256xf32> to vector<8x256xf32>
    %19 = arith.addf %16, %18 : vector<8x256xf32>
    %20 = vector.extract_strided_slice %19 {offsets = [0, 128], sizes = [8, 128], strides = [1, 1]} : vector<8x256xf32> to vector<8x128xf32>
    %cst_17 = arith.constant 5.000000e-01 : f32
    %21 = vector.broadcast %cst_17 : f32 to vector<8x128xf32>
    %22 = arith.mulf %21, %20 : vector<8x128xf32>
    %23 = math.exp %22 : vector<8x128xf32>
    %c0_18 = arith.constant 0 : index
    %c0_19 = arith.constant 0 : index
    %24 = vector.load %arg8[%c0_18, %c0_19] : memref<8x384xf32, #tpu.memory_space<vmem>>, vector<8x256xf32>
    tpu.vector_store %arg8[%c0_18, %c0_19], %19 {strides = array<i32>} : memref<8x384xf32, #tpu.memory_space<vmem>>, vector<8x256xf32>,
    %c0_20 = arith.constant 0 : index
    %c256 = arith.constant 256 : index
    %25 = vector.load %arg8[%c0_20, %c256] : memref<8x384xf32, #tpu.memory_space<vmem>>, vector<8x128xf32>
    tpu.vector_store %arg8[%c0_20, %c256], %23 {strides = array<i32>} : memref<8x384xf32, #tpu.memory_space<vmem>>, vector<8x128xf32>,
    return
  }
  func.func @transform_0(%arg0: i32) -> (i32, i32) {
    %c0_i32 = arith.constant 0 : i32
    %c0_i32_0 = arith.constant 0 : i32
    return %arg0, %c0_i32 : i32, i32
  }
  func.func @transform_1(%arg0: i32) -> (i32, i32) {
    %c0_i32 = arith.constant 0 : i32
    %c0_i32_0 = arith.constant 0 : i32
    %c0_i32_1 = arith.constant 0 : i32
    return %c0_i32, %c0_i32_0 : i32, i32
  }
  func.func @transform_2(%arg0: i32) -> (i32, i32) {
    %c0_i32 = arith.constant 0 : i32
    %c0_i32_0 = arith.constant 0 : i32
    %c0_i32_1 = arith.constant 0 : i32
    return %c0_i32, %c0_i32_0 : i32, i32
  }
  func.func @transform_3(%arg0: i32) -> (i32, i32) {
    %c0_i32 = arith.constant 0 : i32
    %c0_i32_0 = arith.constant 0 : i32
    %c0_i32_1 = arith.constant 0 : i32
    return %c0_i32, %c0_i32_0 : i32, i32
  }
  func.func @transform_4(%arg0: i32) -> (i32, i32) {
    %c0_i32 = arith.constant 0 : i32
    %c0_i32_0 = arith.constant 0 : i32
    %c0_i32_1 = arith.constant 0 : i32
    return %c0_i32, %c0_i32_0 : i32, i32
  }
  func.func @transform_5(%arg0: i32) -> (i32, i32) {
    %c0_i32 = arith.constant 0 : i32
    %c0_i32_0 = arith.constant 0 : i32
    %c0_i32_1 = arith.constant 0 : i32
    return %c0_i32, %c0_i32_0 : i32, i32
  }
  func.func @transform_6(%arg0: i32) -> (i32, i32) {
    %c0_i32 = arith.constant 0 : i32
    %c0_i32_0 = arith.constant 0 : i32
    %c0_i32_1 = arith.constant 0 : i32
    return %c0_i32, %c0_i32_0 : i32, i32
  }
  func.func @transform_7(%arg0: i32) -> (i32, i32) {
    %c0_i32 = arith.constant 0 : i32
    %c0_i32_0 = arith.constant 0 : i32
    return %arg0, %c0_i32 : i32, i32
  }
}

</mosaic_0001>

<llo_original>
// kernel: tpu_custom_call.1
$region0: #{tpu_custom_call.1}
  #allocation0 [shape = 'u32[]', space=smem, size = 0x4, offset = 0x4, fixed_abs, tag = 'smem constant byte address 0x4 - core index']
  #allocation1 [shape = 'u32[144,128]{1,0:T(1,128)}', space=vmem, size = 0x12000, scoped, tag = 'internal scratch']
  %s0 = inlined_call_operand.hbm [shape: f32[8,128], index: 0, kind: input, shape index: {}]
  %s1 = inlined_call_operand.hbm [shape: f32[128,128], index: 1, kind: input, shape index: {}]
  %s2 = inlined_call_operand.vmem [shape: f32[1,128], index: 2, kind: input, shape index: {}]
  %s3 = inlined_call_operand.hbm [shape: f32[128,128], index: 3, kind: input, shape index: {}]
  %s4 = inlined_call_operand.vmem [shape: f32[1,128], index: 4, kind: input, shape index: {}]
  %s5 = inlined_call_operand.hbm [shape: f32[128,256], index: 5, kind: input, shape index: {}]
  %s6 = inlined_call_operand.vmem [shape: f32[1,256], index: 6, kind: input, shape index: {}]
  %s7 = inlined_call_operand.hbm [shape: f32[8,384], index: 7, kind: output, shape index: {}]
  %s8 = sld [smem:[#allocation0]]
  $region54: #{tpu_custom_call.1} parent=0
    _
  %s10 = ssub.s32 1, %s8
  %s11 = scalar_select 0, %s10, %s8
  $region1: #{tpu_custom_call.1} parent=0
    #allocation2 [shape = 'u8[4096]{0}', space=vmem, size = 0x1000, scoped, tag = 'input window, operand 0, single buffered']
    #allocation3 [shape = 's32[1]{0}', space=sflag, size = 0x4, scoped, tag = 'scoped memory for tpu_custom_call.1']
    #allocation4 [shape = 's32[1]{0}', space=sflag, size = 0x4, scoped, tag = 'scoped memory for tpu_custom_call.1']
    #allocation5 [shape = 'u8[65536]{0}', space=vmem, size = 0x10000, scoped, tag = 'input window, operand 1, single buffered']
    #allocation6 [shape = 's32[1]{0}', space=sflag, size = 0x4, scoped, tag = 'scoped memory for tpu_custom_call.1']
    #allocation7 [shape = 'u8[65536]{0}', space=vmem, size = 0x10000, scoped, tag = 'input window, operand 3, single buffered']
    #allocation8 [shape = 'u8[131072]{0}', space=vmem, size = 0x20000, scoped, tag = 'input window, operand 5, single buffered']
    #allocation9 [shape = 's32[1]{0}', space=sflag, size = 0x4, scoped, tag = 'scoped memory for tpu_custom_call.1']
    #allocation10 [shape = 'u8[12288]{0}', space=vmem, size = 0x3000, scoped, tag = 'output window, operand 0, single buffered']
    %12 = vsyncpa [#allocation3], 0
    %13 = vsyncpa [#allocation6], 0
    %14 = vsyncpa [#allocation9], 0
    %15 = vsyncpa [#allocation4], 0
    // Predicated region
    $region2: #{tpu_custom_call.1} parent=1 // pred_check
      _
    $region3: #{tpu_custom_call.1} parent=1 // pred_check_branch
      %17 = sbr.rel (0) target = $region5
    $region4: #{tpu_custom_call.1} parent=1 // pred_region
      %s19 = ssub.s32 128, 128
      %20 = vsyncadd [#allocation3], %s19
      %s22 = sshll.u32 [#allocation2], 4
      %s23 = int_to_ptr.vmem [resolvable:$true] %s22
      %25 = dma.hbm_to_vmem [thread:$0]  %s0, 128, %s23, [#allocation3]
    $region5: #{tpu_custom_call.1} parent=1 // pred_fallthru
      _
    // Predicated region
    $region6: #{tpu_custom_call.1} parent=1 // pred_check
      _
    $region7: #{tpu_custom_call.1} parent=1 // pred_check_branch
      %27 = sbr.rel (0) target = $region9
    $region8: #{tpu_custom_call.1} parent=1 // pred_region
      %s29 = ssub.s32 2048, 2048
      %30 = vsyncadd [#allocation6], %s29
      %s31 = sshll.u32 [#allocation5], 4
      %s32 = int_to_ptr.vmem [resolvable:$true] %s31
      %37 = dma.hbm_to_vmem [thread:$0]  %s1, 2048, %s32, [#allocation6], 128, 128, 8
    $region9: #{tpu_custom_call.1} parent=1 // pred_fallthru
      _
    // Predicated region
    $region10: #{tpu_custom_call.1} parent=1 // pred_check
      _
    $region11: #{tpu_custom_call.1} parent=1 // pred_check_branch
      %39 = sbr.rel (0) target = $region13
    $region12: #{tpu_custom_call.1} parent=1 // pred_region
      _
    $region13: #{tpu_custom_call.1} parent=1 // pred_fallthru
      _
    // Predicated region
    $region14: #{tpu_custom_call.1} parent=1 // pred_check
      _
    $region15: #{tpu_custom_call.1} parent=1 // pred_check_branch
      %41 = sbr.rel (0) target = $region17
    $region16: #{tpu_custom_call.1} parent=1 // pred_region
      %s43 = ssub.s32 2048, 2048
      %44 = vsyncadd [#allocation6], %s43
      %s45 = sshll.u32 [#allocation7], 4
      %s46 = int_to_ptr.vmem [resolvable:$true] %s45
      %51 = dma.hbm_to_vmem [thread:$0]  %s3, 2048, %s46, [#allocation6], 128, 128, 8
    $region17: #{tpu_custom_call.1} parent=1 // pred_fallthru
      _
    // Predicated region
    $region18: #{tpu_custom_call.1} parent=1 // pred_check
      _
    $region19: #{tpu_custom_call.1} parent=1 // pred_check_branch
      %53 = sbr.rel (0) target = $region21
    $region20: #{tpu_custom_call.1} parent=1 // pred_region
      _
    $region21: #{tpu_custom_call.1} parent=1 // pred_fallthru
      _
    // Predicated region
    $region22: #{tpu_custom_call.1} parent=1 // pred_check
      _
    $region23: #{tpu_custom_call.1} parent=1 // pred_check_branch
      %55 = sbr.rel (0) target = $region25
    $region24: #{tpu_custom_call.1} parent=1 // pred_region
      %s57 = ssub.s32 4096, 4096
      %58 = vsyncadd [#allocation9], %s57
      %s59 = sshll.u32 [#allocation8], 4
      %s60 = int_to_ptr.vmem [resolvable:$true] %s59
      %65 = dma.hbm_to_vmem [thread:$0]  %s5, 4096, %s60, [#allocation9], 256, 256, 16
    $region25: #{tpu_custom_call.1} parent=1 // pred_fallthru
      _
    // Predicated region
    $region26: #{tpu_custom_call.1} parent=1 // pred_check
      _
    $region27: #{tpu_custom_call.1} parent=1 // pred_check_branch
      %67 = sbr.rel (0) target = $region29
    $region28: #{tpu_custom_call.1} parent=1 // pred_region
      _
    $region29: #{tpu_custom_call.1} parent=1 // pred_fallthru
      _
    // Predicated region
    $region30: #{tpu_custom_call.1} parent=1 // pred_check
      _
    $region31: #{tpu_custom_call.1} parent=1 // pred_check_branch
      %69 = sbr.rel (0) target = $region33
    $region32: #{tpu_custom_call.1} parent=1 // pred_region
      %70 = dma.done [#allocation3], 128
    $region33: #{tpu_custom_call.1} parent=1 // pred_fallthru
      _
    // Predicated region
    $region34: #{tpu_custom_call.1} parent=1 // pred_check
      _
    $region35: #{tpu_custom_call.1} parent=1 // pred_check_branch
      %72 = sbr.rel (0) target = $region37
    $region36: #{tpu_custom_call.1} parent=1 // pred_region
      %73 = dma.done [#allocation6], 2048
    $region37: #{tpu_custom_call.1} parent=1 // pred_fallthru
      _
    // Predicated region
    $region38: #{tpu_custom_call.1} parent=1 // pred_check
      _
    $region39: #{tpu_custom_call.1} parent=1 // pred_check_branch
      %75 = sbr.rel (0) target = $region41
    $region40: #{tpu_custom_call.1} parent=1 // pred_region
      %76 = dma.done [#allocation6], 2048
    $region41: #{tpu_custom_call.1} parent=1 // pred_fallthru
      _
    // Predicated region
    $region42: #{tpu_custom_call.1} parent=1 // pred_check
      _
    $region43: #{tpu_custom_call.1} parent=1 // pred_check_branch
      %78 = sbr.rel (0) target = $region45
    $region44: #{tpu_custom_call.1} parent=1 // pred_region
      %79 = dma.done [#allocation9], 4096
    $region45: #{tpu_custom_call.1} parent=1 // pred_fallthru
      _
    %v80 = vld [vmem:[#allocation2] sm:$0xff]
    %v81 = vld [vmem:[#allocation5] sm:$0xff]
    %v82 = vld [vmem:[#allocation5 + $0x8] sm:$0xff]
    %v83 = vld [vmem:[#allocation5 + $0x10] sm:$0xff]
    %v84 = vld [vmem:[#allocation5 + $0x18] sm:$0xff]
    %v85 = vld [vmem:[#allocation5 + $0x20] sm:$0xff]
    %v86 = vld [vmem:[#allocation5 + $0x28] sm:$0xff]
    %v87 = vld [vmem:[#allocation5 + $0x30] sm:$0xff]
    %v88 = vld [vmem:[#allocation5 + $0x38] sm:$0xff]
    %v89 = vld [vmem:[#allocation5 + $0x40] sm:$0xff]
    %v90 = vld [vmem:[#allocation5 + $0x48] sm:$0xff]
    %v91 = vld [vmem:[#allocation5 + $0x50] sm:$0xff]
    %v92 = vld [vmem:[#allocation5 + $0x58] sm:$0xff]
    %v93 = vld [vmem:[#allocation5 + $0x60] sm:$0xff]
    %v94 = vld [vmem:[#allocation5 + $0x68] sm:$0xff]
    %v95 = vld [vmem:[#allocation5 + $0x70] sm:$0xff]
    %v96 = vld [vmem:[#allocation5 + $0x78] sm:$0xff]
    %v97 = vld [vmem:[%s2] sm:$0x1]
    %v99 = vlaneseq
    %v100 = vshrl.u32 %v99, 7
    %v101 = vsub.s32 0, %v100
    %v102 = vrot.slane %v97, %v101
    %104 = vmatprep.subr.mxu0 0.0
    %105 = vmatpush1.msra.mxu0 %v81
    %106 = vmatprep.subr.mxu0 0.0
    %107 = vmatpush1.msra.mxu0 %v82
    %108 = vmatprep.subr.mxu0 0.0
    %109 = vmatpush1.msra.mxu0 %v83
    %110 = vmatprep.subr.mxu0 0.0
    %111 = vmatpush1.msra.mxu0 %v84
    %112 = vmatprep.subr.mxu0 0.0
    %113 = vmatpush1.msra.mxu0 %v85
    %114 = vmatprep.subr.mxu0 0.0
    %115 = vmatpush1.msra.mxu0 %v86
    %116 = vmatprep.subr.mxu0 0.0
    %117 = vmatpush1.msra.mxu0 %v87
    %118 = vmatprep.subr.mxu0 0.0
    %119 = vmatpush1.msra.mxu0 %v88
    %120 = vmatprep.subr.mxu0 0.0
    %121 = vmatpush1.msra.mxu0 %v89
    %122 = vmatprep.subr.mxu0 0.0
    %123 = vmatpush1.msra.mxu0 %v90
    %124 = vmatprep.subr.mxu0 0.0
    %125 = vmatpush1.msra.mxu0 %v91
    %126 = vmatprep.subr.mxu0 0.0
    %127 = vmatpush1.msra.mxu0 %v92
    %128 = vmatprep.subr.mxu0 0.0
    %129 = vmatpush1.msra.mxu0 %v93
    %130 = vmatprep.subr.mxu0 0.0
    %131 = vmatpush1.msra.mxu0 %v94
    %132 = vmatprep.subr.mxu0 0.0
    %133 = vmatpush1.msra.mxu0 %v95
    %134 = vmatprep.subr.mxu0 0.0
    %135 = vmatpush1.msra.mxu0 %v96
    %136 = vmatprep.subr.mxu0 0.0
    %137 = vmatpush1.msra.mxu0 0.0
    %138 = vmatprep.subr.mxu0 0.0
    %139 = vmatpush1.msra.mxu0 0.0
    %140 = vmatprep.subr.mxu0 0.0
    %141 = vmatpush1.msra.mxu0 0.0
    %142 = vmatprep.subr.mxu0 0.0
    %143 = vmatpush1.msra.mxu0 0.0
    %144 = vmatprep.subr.mxu0 0.0
    %145 = vmatpush1.msra.mxu0 0.0
    %146 = vmatprep.subr.mxu0 0.0
    %147 = vmatpush1.msra.mxu0 0.0
    %148 = vmatprep.subr.mxu0 0.0
    %149 = vmatpush1.msra.mxu0 0.0
    %150 = vmatprep.subr.mxu0 0.0
    %151 = vmatpush1.msra.mxu0 0.0
    %152 = vmatprep.subr.mxu0 0.0
    %153 = vmatpush1.msra.mxu0 0.0
    %154 = vmatprep.subr.mxu0 0.0
    %155 = vmatpush1.msra.mxu0 0.0
    %156 = vmatprep.subr.mxu0 0.0
    %157 = vmatpush1.msra.mxu0 0.0
    %158 = vmatprep.subr.mxu0 0.0
    %159 = vmatpush1.msra.mxu0 0.0
    %160 = vmatprep.subr.mxu0 0.0
    %161 = vmatpush1.msra.mxu0 0.0
    %162 = vmatprep.subr.mxu0 0.0
    %163 = vmatpush1.msra.mxu0 0.0
    %164 = vmatprep.subr.mxu0 0.0
    %165 = vmatpush1.msra.mxu0 0.0
    %166 = vmatprep.subr.mxu0 0.0
    %167 = vmatpush1.msra.mxu0 0.0
    %168 = vmatprep.mubr.f32.mxu0 0.0
    %169 = vmatmul.mubr.f32.gmra.mrb[0].mxu0 %v80
    %v170 = vpop.f32.mrb[0].mxu0
    %v171 = vadd.f32 %v102, %v170
    %v172 = vpop.f32.mrb[0].mxu0
    %173 = vdwg.mxu0
    %v174 = vmax.f32 %v171, 0.0
    %v175 = vld [vmem:[#allocation7] sm:$0xff]
    %v176 = vld [vmem:[#allocation7 + $0x8] sm:$0xff]
    %v177 = vld [vmem:[#allocation7 + $0x10] sm:$0xff]
    %v178 = vld [vmem:[#allocation7 + $0x18] sm:$0xff]
    %v179 = vld [vmem:[#allocation7 + $0x20] sm:$0xff]
    %v180 = vld [vmem:[#allocation7 + $0x28] sm:$0xff]
    %v181 = vld [vmem:[#allocation7 + $0x30] sm:$0xff]
    %v182 = vld [vmem:[#allocation7 + $0x38] sm:$0xff]
    %v183 = vld [vmem:[#allocation7 + $0x40] sm:$0xff]
    %v184 = vld [vmem:[#allocation7 + $0x48] sm:$0xff]
    %v185 = vld [vmem:[#allocation7 + $0x50] sm:$0xff]
    %v186 = vld [vmem:[#allocation7 + $0x58] sm:$0xff]
    %v187 = vld [vmem:[#allocation7 + $0x60] sm:$0xff]
    %v188 = vld [vmem:[#allocation7 + $0x68] sm:$0xff]
    %v189 = vld [vmem:[#allocation7 + $0x70] sm:$0xff]
    %v190 = vld [vmem:[#allocation7 + $0x78] sm:$0xff]
    %v191 = vld [vmem:[%s4] sm:$0x1]
    %v193 = vlaneseq
    %v194 = vshrl.u32 %v193, 7
    %v195 = vsub.s32 0, %v194
    %v196 = vrot.slane %v191, %v195
    %198 = vmatprep.subr.mxu0 0.0
    %199 = vmatpush1.msra.mxu0 %v175
    %200 = vmatprep.subr.mxu0 0.0
    %201 = vmatpush1.msra.mxu0 %v176
    %202 = vmatprep.subr.mxu0 0.0
    %203 = vmatpush1.msra.mxu0 %v177
    %204 = vmatprep.subr.mxu0 0.0
    %205 = vmatpush1.msra.mxu0 %v178
    %206 = vmatprep.subr.mxu0 0.0
    %207 = vmatpush1.msra.mxu0 %v179
    %208 = vmatprep.subr.mxu0 0.0
    %209 = vmatpush1.msra.mxu0 %v180
    %210 = vmatprep.subr.mxu0 0.0
    %211 = vmatpush1.msra.mxu0 %v181
    %212 = vmatprep.subr.mxu0 0.0
    %213 = vmatpush1.msra.mxu0 %v182
    %214 = vmatprep.subr.mxu0 0.0
    %215 = vmatpush1.msra.mxu0 %v183
    %216 = vmatprep.subr.mxu0 0.0
    %217 = vmatpush1.msra.mxu0 %v184
    %218 = vmatprep.subr.mxu0 0.0
    %219 = vmatpush1.msra.mxu0 %v185
    %220 = vmatprep.subr.mxu0 0.0
    %221 = vmatpush1.msra.mxu0 %v186
    %222 = vmatprep.subr.mxu0 0.0
    %223 = vmatpush1.msra.mxu0 %v187
    %224 = vmatprep.subr.mxu0 0.0
    %225 = vmatpush1.msra.mxu0 %v188
    %226 = vmatprep.subr.mxu0 0.0
    %227 = vmatpush1.msra.mxu0 %v189
    %228 = vmatprep.subr.mxu0 0.0
    %229 = vmatpush1.msra.mxu0 %v190
    %230 = vmatprep.subr.mxu0 0.0
    %231 = vmatpush1.msra.mxu0 0.0
    %232 = vmatprep.subr.mxu0 0.0
    %233 = vmatpush1.msra.mxu0 0.0
    %234 = vmatprep.subr.mxu0 0.0
    %235 = vmatpush1.msra.mxu0 0.0
    %236 = vmatprep.subr.mxu0 0.0
    %237 = vmatpush1.msra.mxu0 0.0
    %238 = vmatprep.subr.mxu0 0.0
    %239 = vmatpush1.msra.mxu0 0.0
    %240 = vmatprep.subr.mxu0 0.0
    %241 = vmatpush1.msra.mxu0 0.0
    %242 = vmatprep.subr.mxu0 0.0
    %243 = vmatpush1.msra.mxu0 0.0
    %244 = vmatprep.subr.mxu0 0.0
    %245 = vmatpush1.msra.mxu0 0.0
    %246 = vmatprep.subr.mxu0 0.0
    %247 = vmatpush1.msra.mxu0 0.0
    %248 = vmatprep.subr.mxu0 0.0
    %249 = vmatpush1.msra.mxu0 0.0
    %250 = vmatprep.subr.mxu0 0.0
    %251 = vmatpush1.msra.mxu0 0.0
    %252 = vmatprep.subr.mxu0 0.0
    %253 = vmatpush1.msra.mxu0 0.0
    %254 = vmatprep.subr.mxu0 0.0
    %255 = vmatpush1.msra.mxu0 0.0
    %256 = vmatprep.subr.mxu0 0.0
    %257 = vmatpush1.msra.mxu0 0.0
    %258 = vmatprep.subr.mxu0 0.0
    %259 = vmatpush1.msra.mxu0 0.0
    %260 = vmatprep.subr.mxu0 0.0
    %261 = vmatpush1.msra.mxu0 0.0
    %262 = vmatprep.mubr.f32.mxu0 0.0
    %263 = vmatmul.mubr.f32.gmra.mrb[0].mxu0 %v174
    %v264 = vpop.f32.mrb[0].mxu0
    %v265 = vadd.f32 %v196, %v264
    %v266 = vpop.f32.mrb[0].mxu0
    %267 = vdwg.mxu0
    %v268 = vmax.f32 %v265, 0.0
    %v269 = vld [vmem:[#allocation8] sm:$0xff]
    %v270 = vld [vmem:[#allocation8 + $0x8] sm:$0xff]
    %v271 = vld [vmem:[#allocation8 + $0x10] sm:$0xff]
    %v272 = vld [vmem:[#allocation8 + $0x18] sm:$0xff]
    %v273 = vld [vmem:[#allocation8 + $0x20] sm:$0xff]
    %v274 = vld [vmem:[#allocation8 + $0x28] sm:$0xff]
    %v275 = vld [vmem:[#allocation8 + $0x30] sm:$0xff]
    %v276 = vld [vmem:[#allocation8 + $0x38] sm:$0xff]
    %v277 = vld [vmem:[#allocation8 + $0x40] sm:$0xff]
    %v278 = vld [vmem:[#allocation8 + $0x48] sm:$0xff]
    %v279 = vld [vmem:[#allocation8 + $0x50] sm:$0xff]
    %v280 = vld [vmem:[#allocation8 + $0x58] sm:$0xff]
    %v281 = vld [vmem:[#allocation8 + $0x60] sm:$0xff]
    %v282 = vld [vmem:[#allocation8 + $0x68] sm:$0xff]
    %v283 = vld [vmem:[#allocation8 + $0x70] sm:$0xff]
    %v284 = vld [vmem:[#allocation8 + $0x78] sm:$0xff]
    %v285 = vld [vmem:[#allocation8 + $0x80] sm:$0xff]
    %v286 = vld [vmem:[#allocation8 + $0x88] sm:$0xff]
    %v287 = vld [vmem:[#allocation8 + $0x90] sm:$0xff]
    %v288 = vld [vmem:[#allocation8 + $0x98] sm:$0xff]
    %v289 = vld [vmem:[#allocation8 + $0xa0] sm:$0xff]
    %v290 = vld [vmem:[#allocation8 + $0xa8] sm:$0xff]
    %v291 = vld [vmem:[#allocation8 + $0xb0] sm:$0xff]
    %v292 = vld [vmem:[#allocation8 + $0xb8] sm:$0xff]
    %v293 = vld [vmem:[#allocation8 + $0xc0] sm:$0xff]
    %v294 = vld [vmem:[#allocation8 + $0xc8] sm:$0xff]
    %v295 = vld [vmem:[#allocation8 + $0xd0] sm:$0xff]
    %v296 = vld [vmem:[#allocation8 + $0xd8] sm:$0xff]
    %v297 = vld [vmem:[#allocation8 + $0xe0] sm:$0xff]
    %v298 = vld [vmem:[#allocation8 + $0xe8] sm:$0xff]
    %v299 = vld [vmem:[#allocation8 + $0xf0] sm:$0xff]
    %v300 = vld [vmem:[#allocation8 + $0xf8] sm:$0xff]
    %v301 = vld [vmem:[%s6] sm:$0x3]
    %v303 = vlaneseq
    %v304 = vshrl.u32 %v303, 7
    %v305 = vsub.s32 0, %v304
    %v306 = vrot.slane %v301, %v305
    %v307 = vlaneseq
    %v308 = vshrl.u32 %v307, 7
    %v309 = vsub.s32 1, %v308
    %v310 = vrot.slane %v301, %v309
    %313 = vmatprep.subr.mxu0 %v270
    %314 = vmatpush1.msra.mxu0 %v269
    %315 = vmatprep.subr.mxu0 %v272
    %316 = vmatpush1.msra.mxu0 %v271
    %317 = vmatprep.subr.mxu0 %v274
    %318 = vmatpush1.msra.mxu0 %v273
    %319 = vmatprep.subr.mxu0 %v276
    %320 = vmatpush1.msra.mxu0 %v275
    %321 = vmatprep.subr.mxu0 %v278
    %322 = vmatpush1.msra.mxu0 %v277
    %323 = vmatprep.subr.mxu0 %v280
    %324 = vmatpush1.msra.mxu0 %v279
    %325 = vmatprep.subr.mxu0 %v282
    %326 = vmatpush1.msra.mxu0 %v281
    %327 = vmatprep.subr.mxu0 %v284
    %328 = vmatpush1.msra.mxu0 %v283
    %329 = vmatprep.subr.mxu0 %v286
    %330 = vmatpush1.msra.mxu0 %v285
    %331 = vmatprep.subr.mxu0 %v288
    %332 = vmatpush1.msra.mxu0 %v287
    %333 = vmatprep.subr.mxu0 %v290
    %334 = vmatpush1.msra.mxu0 %v289
    %335 = vmatprep.subr.mxu0 %v292
    %336 = vmatpush1.msra.mxu0 %v291
    %337 = vmatprep.subr.mxu0 %v294
    %338 = vmatpush1.msra.mxu0 %v293
    %339 = vmatprep.subr.mxu0 %v296
    %340 = vmatpush1.msra.mxu0 %v295
    %341 = vmatprep.subr.mxu0 %v298
    %342 = vmatpush1.msra.mxu0 %v297
    %343 = vmatprep.subr.mxu0 %v300
    %344 = vmatpush1.msra.mxu0 %v299
    %345 = vmatprep.subr.mxu0 0.0
    %346 = vmatpush1.msra.mxu0 0.0
    %347 = vmatprep.subr.mxu0 0.0
    %348 = vmatpush1.msra.mxu0 0.0
    %349 = vmatprep.subr.mxu0 0.0
    %350 = vmatpush1.msra.mxu0 0.0
    %351 = vmatprep.subr.mxu0 0.0
    %352 = vmatpush1.msra.mxu0 0.0
    %353 = vmatprep.subr.mxu0 0.0
    %354 = vmatpush1.msra.mxu0 0.0
    %355 = vmatprep.subr.mxu0 0.0
    %356 = vmatpush1.msra.mxu0 0.0
    %357 = vmatprep.subr.mxu0 0.0
    %358 = vmatpush1.msra.mxu0 0.0
    %359 = vmatprep.subr.mxu0 0.0
    %360 = vmatpush1.msra.mxu0 0.0
    %361 = vmatprep.subr.mxu0 0.0
    %362 = vmatpush1.msra.mxu0 0.0
    %363 = vmatprep.subr.mxu0 0.0
    %364 = vmatpush1.msra.mxu0 0.0
    %365 = vmatprep.subr.mxu0 0.0
    %366 = vmatpush1.msra.mxu0 0.0
    %367 = vmatprep.subr.mxu0 0.0
    %368 = vmatpush1.msra.mxu0 0.0
    %369 = vmatprep.subr.mxu0 0.0
    %370 = vmatpush1.msra.mxu0 0.0
    %371 = vmatprep.subr.mxu0 0.0
    %372 = vmatpush1.msra.mxu0 0.0
    %373 = vmatprep.subr.mxu0 0.0
    %374 = vmatpush1.msra.mxu0 0.0
    %375 = vmatprep.subr.mxu0 0.0
    %376 = vmatpush1.msra.mxu0 0.0
    %377 = vmatprep.mubr.f32.mxu0 0.0
    %378 = vmatmul.mubr.f32.gmra.mrb[0].mxu0 %v268
    %v379 = vpop.f32.mrb[0].mxu0
    %v380 = vadd.f32 %v306, %v379
    %v381 = vpop.f32.mrb[0].mxu0
    %v382 = vadd.f32 %v310, %v381
    %383 = vdwg.mxu0
    %v384 = vmul.f32 %v382, 0.5
    %v385 = vmul.f32 %v384, 1.442695
    %v386 = vpow.pop %v385
    %387 = vst [vmem:[#allocation10] sm:$0xff] %v380
    %388 = vst [vmem:[#allocation10 + $0x8] sm:$0xff] %v382
    %389 = vst [vmem:[#allocation10 + $0x10] sm:$0xff] %v386
    // Predicated region
    $region46: #{tpu_custom_call.1} parent=1 // pred_check
      _
    $region47: #{tpu_custom_call.1} parent=1 // pred_check_branch
      %391 = sbr.rel (0) target = $region49
    $region48: #{tpu_custom_call.1} parent=1 // pred_region
      %s393 = ssub.s32 384, 384
      %394 = vsyncadd [#allocation4], %s393
      %s396 = sshll.u32 [#allocation10], 4
      %s397 = int_to_ptr.vmem [resolvable:$true] %s396
      %399 = dma.vmem_to_hbm [thread:$0]  %s397, 384, %s7, [#allocation4]
    $region49: #{tpu_custom_call.1} parent=1 // pred_fallthru
      _
    // Predicated region
    $region50: #{tpu_custom_call.1} parent=1 // pred_check
      _
    $region51: #{tpu_custom_call.1} parent=1 // pred_check_branch
      %401 = sbr.rel (0) target = $region53
    $region52: #{tpu_custom_call.1} parent=1 // pred_region
      %402 = dma.done [#allocation4], 384
    $region53: #{tpu_custom_call.1} parent=1 // pred_fallthru
      _
    %403 = vsyncpa [#allocation3], 1
    %404 = vsyncpa [#allocation6], 1
    %405 = vsyncpa [#allocation9], 1
    %406 = vsyncpa [#allocation4], 1

</llo_original>
